<compile_context>
chip_gen: v5e
topology: v5e:2x2
jax: 0.10.0
libtpu: 0.0.40
codegen_flags: <defaults>
</compile_context>

<pallas_src>
import functools

import jax
import jax.numpy as jnp
from jax.experimental import pallas as pl
from jax.experimental.pallas import tpu as pltpu

LANES = 128
SUBLANES = 8
# 4096 x 128 f32 = 2 MiB per input block.
MAX_TILE_ROWS = 4096


def _bce_elems(x, t):
    # Numerically stable BCEWithLogits (matches PyTorch):
    #   max(x, 0) - x*t + log1p(exp(-|x|))
    return jnp.maximum(x, 0.0) - x * t + jnp.log1p(jnp.exp(-jnp.abs(x)))


def _softplus_part(x):
    # BCE without the x*t term (reconstructed in the wrapper from sum(x*t)).
    # NOTE: 2 EUP transcendentals per element (exp + log1p); on v5e confirm with
    # a bundle dump that the single EUP slot still has slack before more tuning.
    return jnp.maximum(x, 0.0) + jnp.log1p(jnp.exp(-jnp.abs(x)))


def _fold_rows(v):
    """(r, 128) -> (8, 128) row-group tree-add.  Pure VALU (no XLU); r % 8 == 0."""
    r, c = v.shape
    assert r % SUBLANES == 0
    if r == SUBLANES:
        return v
    return jnp.sum(v.reshape(r // SUBLANES, SUBLANES, c), axis=0)


def dice_bce_kernel(x_ref, t_ref, out_ref, acc_sp, acc_dot, acc_sum, *,
                    rows_valid, steps_per_core):
    """Streams row-tiles; per-step row-fold into (8,128) f32 accumulators.

    x_ref/t_ref : VMEM (tile_rows, 128) logits / targets tile
    out_ref     : SMEM (1, 3) f32 per-core partials
                  [sum(max(x,0)+log1p(exp(-|x|))), sum(x*t), sum(x+t)]
    acc_*       : VMEM (8, 128) f32 per-core accumulators
    """
    c = pl.program_id(0)
    s = pl.program_id(1)
    tile_rows = x_ref.shape[0]

    @pl.when(s == 0)
    def _():
        acc_sp[...] = jnp.zeros_like(acc_sp)
        acc_dot[...] = jnp.zeros_like(acc_dot)
        acc_sum[...] = jnp.zeros_like(acc_sum)

    tile_idx = c * steps_per_core + s          # logical tile index
    row_start = tile_idx * tile_rows           # logical first row of this tile

    def accumulate(x, t, valid=None):
        sp = _softplus_part(x)
        if valid is not None:
            # Masked elements have x == t == 0 but softplus(0) = log(2) != 0.
            sp = jnp.where(valid, sp, 0.0)
        acc_sp[...] += _fold_rows(sp)
        acc_dot[...] += _fold_rows(x * t)
        acc_sum[...] += _fold_rows(x + t)

    fully_valid = row_start + tile_rows <= rows_valid

    # Fast path: tile lies entirely inside the valid row range, no masking.
    @pl.when(fully_valid)
    def _():
        accumulate(x_ref[...].astype(jnp.float32), t_ref[...].astype(jnp.float32))

    # Slow path: ragged / duplicated tile -> zero x,t BEFORE exp/log1p so
    # undefined out-of-range data can never poison the sums.
    @pl.when(jnp.logical_not(fully_valid))
    def _():
        x = x_ref[...].astype(jnp.float32)
        t = t_ref[...].astype(jnp.float32)
        row_ids = jax.lax.broadcasted_iota(jnp.int32, x.shape, 0) + row_start
        valid = row_ids < rows_valid
        x = jnp.where(valid, x, 0.0)
        t = jnp.where(valid, t, 0.0)
        accumulate(x, t, valid=valid)

    # Per-core finalize: single cross-lane reduce of the tiny accumulators.
    @pl.when(s == steps_per_core - 1)
    def _():
        out_ref[0, 0] = jnp.sum(acc_sp[...])
        out_ref[0, 1] = jnp.sum(acc_dot[...])
        out_ref[0, 2] = jnp.sum(acc_sum[...])


def _partial_sums_pallas(x2, t2):
    rows = x2.shape[0]                      # guaranteed multiple of 8
    tile_rows = min(MAX_TILE_ROWS, rows)    # multiple of 8 either way
    num_tiles = pl.cdiv(rows, tile_rows)
    n_cores = 2 if num_tiles > 1 else 1     # v7x: one half per TensorCore
    steps_per_core = pl.cdiv(num_tiles, n_cores)

    def tile_map(c, s):
        # Clamp so an odd tile count never yields an out-of-range block index
        # for core 1; the row mask zeroes the duplicated tile's contribution.
        return (jnp.minimum(c * steps_per_core + s, num_tiles - 1), 0)

    kernel = functools.partial(
        dice_bce_kernel, rows_valid=rows, steps_per_core=steps_per_core)

    return pl.pallas_call(
        kernel,
        out_shape=jax.ShapeDtypeStruct((n_cores, 3), jnp.float32),
        grid_spec=pltpu.PrefetchScalarGridSpec(
            num_scalar_prefetch=0,
            grid=(n_cores, steps_per_core),
            in_specs=[
                pl.BlockSpec((tile_rows, LANES), tile_map),
                pl.BlockSpec((tile_rows, LANES), tile_map),
            ],
            out_specs=pl.BlockSpec((1, 3), lambda c, s: (c, 0),
                                   memory_space=pltpu.SMEM),
            scratch_shapes=[
                pltpu.VMEM((SUBLANES, LANES), jnp.float32),
                pltpu.VMEM((SUBLANES, LANES), jnp.float32),
                pltpu.VMEM((SUBLANES, LANES), jnp.float32),
            ],
        ),
        compiler_params=pltpu.CompilerParams(
            dimension_semantics=("parallel", "arbitrary"),
            vmem_limit_bytes=32 * 1024 * 1024,
        ),
    )(x2, t2)


@functools.partial(jax.jit, static_argnames=("smooth",))
def dice_bce_loss(inputs, targets, smooth=1.0):
    # Flatten (matches torch.flatten, row-major). Keep native dtype: the kernel
    # casts per-tile, so bf16 inputs stream at half the HBM read cost.
    x = jnp.ravel(inputs)
    t = jnp.ravel(targets)
    n = x.shape[0]

    # Main region is a multiple of 8*128 so rows % 8 == 0 (register row-fold
    # never needs padding); the <1024-element tail is plain jnp.
    chunk = SUBLANES * LANES
    n_main = (n // chunk) * chunk
    rows = n_main // LANES

    if rows > 0:
        # TODO(synk): for very large inputs with n % 1024 != 0 this prefix slice
        # may materialize a copy in HBM; align input sizes to multiples of 1024
        # (or pad upstream) to guarantee ~1x HBM traffic.
        xm = x if n_main == n else x[:n_main]
        tm = t if n_main == n else t[:n_main]
        partials = _partial_sums_pallas(
            xm.reshape(rows, LANES), tm.reshape(rows, LANES))
        sums = jnp.sum(partials, axis=0)        # combine per-core partials
        dot_sum = sums[1]
        xt_sum = sums[2]
        bce_sum = sums[0] - dot_sum             # reconstruct full BCE sum
    else:
        bce_sum = jnp.float32(0.0)
        dot_sum = jnp.float32(0.0)
        xt_sum = jnp.float32(0.0)

    # Ragged tail (< 1024 elements, if any): negligible plain-jnp work.
    if n_main != n:
        xr = x[n_main:].astype(jnp.float32)
        tr = t[n_main:].astype(jnp.float32)
        bce_sum = bce_sum + jnp.sum(_bce_elems(xr, tr))
        dot_sum = dot_sum + jnp.sum(xr * tr)
        xt_sum = xt_sum + jnp.sum(xr + tr)

    bce_mean = bce_sum / jnp.float32(n)
    dice_loss = 1.0 - (2.0 * dot_sum + smooth) / (xt_sum + smooth)
    return bce_mean + dice_loss


def dice_bce_reference(inputs, targets, smooth=1.0):
    x = jnp.ravel(inputs).astype(jnp.float32)
    t = jnp.ravel(targets).astype(jnp.float32)
    bce = jnp.mean(_bce_elems(x, t))
    intersection = jnp.dot(t, x)
    dice = 1.0 - (2.0 * intersection + smooth) / (jnp.sum(t) + jnp.sum(x) + smooth)
    return bce + dice


if __name__ == "__main__":
    key = jax.random.PRNGKey(0)
    k1, k2 = jax.random.split(key)
    # Logits (raw network outputs) and binary targets, NCHW.
    inputs = jax.random.normal(k1, (2, 4, 16, 16), dtype=jnp.float32)
    targets = (jax.random.uniform(k2, (2, 4, 16, 16)) > 0.5).astype(jnp.float32)

    loss = dice_bce_loss(inputs, targets)
    loss = jax.block_until_ready(loss)

    ref = dice_bce_reference(inputs, targets)
    assert jnp.allclose(loss, ref, rtol=1e-5, atol=1e-5), (loss, ref)

    print("KERNEL_OK")
</pallas_src>

<mosaic_0001>
module attributes {stable_mosaic.version = 11 : i64} {
  func.func @dice_bce_kernel(%arg0: i32, %arg1: i32, %arg2: memref<16x128xf32, #tpu.memory_space<vmem>>, %arg3: memref<16x128xf32, #tpu.memory_space<vmem>>, %arg4: memref<1x3xf32, #tpu.memory_space<smem>>, %arg5: memref<8x128xf32, #tpu.memory_space<vmem>>, %arg6: memref<8x128xf32, #tpu.memory_space<vmem>>, %arg7: memref<8x128xf32, #tpu.memory_space<vmem>>) attributes {dimension_semantics = [#tpu.dimension_semantics<parallel>, #tpu.dimension_semantics<arbitrary>], iteration_bounds = array<i64: 1, 1>, scalar_prefetch = 0 : i64, scratch_operands = 3 : i64, tpu.core_type = #tpu.core_type<tc>, window_params = [{transform_indices = @transform_0, window_bounds = array<i64: 16, 128>}, {transform_indices = @transform_1, window_bounds = array<i64: 16, 128>}, {transform_indices = @transform_2, window_bounds = array<i64: 1, 3>}]} {
    %c0_i32 = arith.constant 0 : i32
    %0 = arith.cmpi eq, %arg1, %c0_i32 : i32
    %1 = arith.extui %0 : i1 to i32
    %c0_i32_0 = arith.constant 0 : i32
    %2 = arith.cmpi ne, %1, %c0_i32_0 : i32
    scf.if %2 {
      %cst = arith.constant 0.000000e+00 : f32
      %16 = vector.broadcast %cst : f32 to vector<8x128xf32>
      %c0 = arith.constant 0 : index
      %c0_7 = arith.constant 0 : index
      %17 = vector.load %arg5[%c0, %c0_7] : memref<8x128xf32, #tpu.memory_space<vmem>>, vector<8x128xf32>
      tpu.vector_store %arg5[%c0, %c0_7], %16 {strides = array<i32>} : memref<8x128xf32, #tpu.memory_space<vmem>>, vector<8x128xf32>,
      %cst_8 = arith.constant 0.000000e+00 : f32
      %18 = vector.broadcast %cst_8 : f32 to vector<8x128xf32>
      %c0_9 = arith.constant 0 : index
      %c0_10 = arith.constant 0 : index
      %19 = vector.load %arg6[%c0_9, %c0_10] : memref<8x128xf32, #tpu.memory_space<vmem>>, vector<8x128xf32>
      tpu.vector_store %arg6[%c0_9, %c0_10], %18 {strides = array<i32>} : memref<8x128xf32, #tpu.memory_space<vmem>>, vector<8x128xf32>,
      %cst_11 = arith.constant 0.000000e+00 : f32
      %20 = vector.broadcast %cst_11 : f32 to vector<8x128xf32>
      %c0_12 = arith.constant 0 : index
      %c0_13 = arith.constant 0 : index
      %21 = vector.load %arg7[%c0_12, %c0_13] : memref<8x128xf32, #tpu.memory_space<vmem>>, vector<8x128xf32>
      tpu.vector_store %arg7[%c0_12, %c0_13], %20 {strides = array<i32>} : memref<8x128xf32, #tpu.memory_space<vmem>>, vector<8x128xf32>,
    } else {
    }
    %c1_i32 = arith.constant 1 : i32
    %3 = arith.muli %arg0, %c1_i32 : i32
    %4 = arith.addi %3, %arg1 : i32
    %c16_i32 = arith.constant 16 : i32
    %5 = arith.muli %4, %c16_i32 : i32
    %c16_i32_1 = arith.constant 16 : i32
    %6 = arith.addi %5, %c16_i32_1 : i32
    %c16_i32_2 = arith.constant 16 : i32
    %7 = arith.cmpi sle, %6, %c16_i32_2 : i32
    %8 = arith.extui %7 : i1 to i32
    %c0_i32_3 = arith.constant 0 : i32
    %9 = arith.cmpi ne, %8, %c0_i32_3 : i32
    scf.if %9 {
      %c0 = arith.constant 0 : index
      %c0_7 = arith.constant 0 : index
      %16 = vector.load %arg2[%c0, %c0_7] : memref<16x128xf32, #tpu.memory_space<vmem>>, vector<16x128xf32>
      %c0_8 = arith.constant 0 : index
      %c0_9 = arith.constant 0 : index
      %17 = vector.load %arg3[%c0_8, %c0_9] : memref<16x128xf32, #tpu.memory_space<vmem>>, vector<16x128xf32>
      %cst = arith.constant 0.000000e+00 : f32
      %18 = vector.broadcast %cst : f32 to vector<16x128xf32>
      %19 = arith.maximumf %16, %18 : vector<16x128xf32>
      %20 = math.absf %16 : vector<16x128xf32>
      %cst_10 = arith.constant 0.000000e+00 : f32
      %21 = vector.broadcast %cst_10 : f32 to vector<16x128xf32>
      %22 = arith.subf %21, %20 : vector<16x128xf32>
      %23 = math.exp %22 : vector<16x128xf32>
      %24 = math.log1p %23 : vector<16x128xf32>
      %25 = arith.addf %19, %24 : vector<16x128xf32>
      %c0_11 = arith.constant 0 : index
      %c0_12 = arith.constant 0 : index
      %26 = vector.load %arg5[%c0_11, %c0_12] : memref<8x128xf32, #tpu.memory_space<vmem>>, vector<8x128xf32>
      %27 = vector.shape_cast %25 : vector<16x128xf32> to vector<2x8x128xf32>
      %cst_13 = arith.constant dense<0.000000e+00> : vector<8x128xf32>
      %28 = vector.multi_reduction <add>, %27, %cst_13 [0] : vector<2x8x128xf32> to vector<8x128xf32>
      %29 = arith.addf %26, %28 : vector<8x128xf32>
      %c0_14 = arith.constant 0 : index
      %c0_15 = arith.constant 0 : index
      %30 = vector.load %arg5[%c0_14, %c0_15] : memref<8x128xf32, #tpu.memory_space<vmem>>, vector<8x128xf32>
      tpu.vector_store %arg5[%c0_14, %c0_15], %29 {strides = array<i32>} : memref<8x128xf32, #tpu.memory_space<vmem>>, vector<8x128xf32>,
      %c0_16 = arith.constant 0 : index
      %c0_17 = arith.constant 0 : index
      %31 = vector.load %arg6[%c0_16, %c0_17] : memref<8x128xf32, #tpu.memory_space<vmem>>, vector<8x128xf32>
      %32 = arith.mulf %16, %17 : vector<16x128xf32>
      %33 = vector.shape_cast %32 : vector<16x128xf32> to vector<2x8x128xf32>
      %cst_18 = arith.constant dense<0.000000e+00> : vector<8x128xf32>
      %34 = vector.multi_reduction <add>, %33, %cst_18 [0] : vector<2x8x128xf32> to vector<8x128xf32>
      %35 = arith.addf %31, %34 : vector<8x128xf32>
      %c0_19 = arith.constant 0 : index
      %c0_20 = arith.constant 0 : index
      %36 = vector.load %arg6[%c0_19, %c0_20] : memref<8x128xf32, #tpu.memory_space<vmem>>, vector<8x128xf32>
      tpu.vector_store %arg6[%c0_19, %c0_20], %35 {strides = array<i32>} : memref<8x128xf32, #tpu.memory_space<vmem>>, vector<8x128xf32>,
      %c0_21 = arith.constant 0 : index
      %c0_22 = arith.constant 0 : index
      %37 = vector.load %arg7[%c0_21, %c0_22] : memref<8x128xf32, #tpu.memory_space<vmem>>, vector<8x128xf32>
      %38 = arith.addf %16, %17 : vector<16x128xf32>
      %39 = vector.shape_cast %38 : vector<16x128xf32> to vector<2x8x128xf32>
      %cst_23 = arith.constant dense<0.000000e+00> : vector<8x128xf32>
      %40 = vector.multi_reduction <add>, %39, %cst_23 [0] : vector<2x8x128xf32> to vector<8x128xf32>
      %41 = arith.addf %37, %40 : vector<8x128xf32>
      %c0_24 = arith.constant 0 : index
      %c0_25 = arith.constant 0 : index
      %42 = vector.load %arg7[%c0_24, %c0_25] : memref<8x128xf32, #tpu.memory_space<vmem>>, vector<8x128xf32>
      tpu.vector_store %arg7[%c0_24, %c0_25], %41 {strides = array<i32>} : memref<8x128xf32, #tpu.memory_space<vmem>>, vector<8x128xf32>,
    } else {
    }
    %true = arith.constant true
    %10 = arith.xori %7, %true : i1
    %11 = arith.extui %10 : i1 to i32
    %c0_i32_4 = arith.constant 0 : i32
    %12 = arith.cmpi ne, %11, %c0_i32_4 : i32
    scf.if %12 {
      %c0 = arith.constant 0 : index
      %c0_7 = arith.constant 0 : index
      %16 = vector.load %arg2[%c0, %c0_7] : memref<16x128xf32, #tpu.memory_space<vmem>>, vector<16x128xf32>
      %c0_8 = arith.constant 0 : index
      %c0_9 = arith.constant 0 : index
      %17 = vector.load %arg3[%c0_8, %c0_9] : memref<16x128xf32, #tpu.memory_space<vmem>>, vector<16x128xf32>
      %18 = tpu.iota {dimensions = array<i32: 0>} : vector<16x128xi32>
      %19 = vector.broadcast %5 : i32 to vector<16x128xi32>
      %20 = arith.addi %18, %19 : vector<16x128xi32>
      %c16_i32_10 = arith.constant 16 : i32
      %21 = vector.broadcast %c16_i32_10 : i32 to vector<16x128xi32>
      %22 = arith.cmpi slt, %20, %21 : vector<16x128xi32>
      %cst = arith.constant 0.000000e+00 : f32
      %23 = vector.broadcast %cst : f32 to vector<16x128xf32>
      %24 = arith.select %22, %16, %23 : vector<16x128xi1>, vector<16x128xf32>
      %cst_11 = arith.constant 0.000000e+00 : f32
      %25 = vector.broadcast %cst_11 : f32 to vector<16x128xf32>
      %26 = arith.select %22, %17, %25 : vector<16x128xi1>, vector<16x128xf32>
      %cst_12 = arith.constant 0.000000e+00 : f32
      %27 = vector.broadcast %cst_12 : f32 to vector<16x128xf32>
      %28 = arith.maximumf %24, %27 : vector<16x128xf32>
      %29 = math.absf %24 : vector<16x128xf32>
      %cst_13 = arith.constant 0.000000e+00 : f32
      %30 = vector.broadcast %cst_13 : f32 to vector<16x128xf32>
      %31 = arith.subf %30, %29 : vector<16x128xf32>
      %32 = math.exp %31 : vector<16x128xf32>
      %33 = math.log1p %32 : vector<16x128xf32>
      %34 = arith.addf %28, %33 : vector<16x128xf32>
      %cst_14 = arith.constant 0.000000e+00 : f32
      %35 = vector.broadcast %cst_14 : f32 to vector<16x128xf32>
      %36 = arith.select %22, %34, %35 : vector<16x128xi1>, vector<16x128xf32>
      %c0_15 = arith.constant 0 : index
      %c0_16 = arith.constant 0 : index
      %37 = vector.load %arg5[%c0_15, %c0_16] : memref<8x128xf32, #tpu.memory_space<vmem>>, vector<8x128xf32>
      %38 = vector.shape_cast %36 : vector<16x128xf32> to vector<2x8x128xf32>
      %cst_17 = arith.constant dense<0.000000e+00> : vector<8x128xf32>
      %39 = vector.multi_reduction <add>, %38, %cst_17 [0] : vector<2x8x128xf32> to vector<8x128xf32>
      %40 = arith.addf %37, %39 : vector<8x128xf32>
      %c0_18 = arith.constant 0 : index
      %c0_19 = arith.constant 0 : index
      %41 = vector.load %arg5[%c0_18, %c0_19] : memref<8x128xf32, #tpu.memory_space<vmem>>, vector<8x128xf32>
      tpu.vector_store %arg5[%c0_18, %c0_19], %40 {strides = array<i32>} : memref<8x128xf32, #tpu.memory_space<vmem>>, vector<8x128xf32>,
      %c0_20 = arith.constant 0 : index
      %c0_21 = arith.constant 0 : index
      %42 = vector.load %arg6[%c0_20, %c0_21] : memref<8x128xf32, #tpu.memory_space<vmem>>, vector<8x128xf32>
      %43 = arith.mulf %24, %26 : vector<16x128xf32>
      %44 = vector.shape_cast %43 : vector<16x128xf32> to vector<2x8x128xf32>
      %cst_22 = arith.constant dense<0.000000e+00> : vector<8x128xf32>
      %45 = vector.multi_reduction <add>, %44, %cst_22 [0] : vector<2x8x128xf32> to vector<8x128xf32>
      %46 = arith.addf %42, %45 : vector<8x128xf32>
      %c0_23 = arith.constant 0 : index
      %c0_24 = arith.constant 0 : index
      %47 = vector.load %arg6[%c0_23, %c0_24] : memref<8x128xf32, #tpu.memory_space<vmem>>, vector<8x128xf32>
      tpu.vector_store %arg6[%c0_23, %c0_24], %46 {strides = array<i32>} : memref<8x128xf32, #tpu.memory_space<vmem>>, vector<8x128xf32>,
      %c0_25 = arith.constant 0 : index
      %c0_26 = arith.constant 0 : index
      %48 = vector.load %arg7[%c0_25, %c0_26] : memref<8x128xf32, #tpu.memory_space<vmem>>, vector<8x128xf32>
      %49 = arith.addf %24, %26 : vector<16x128xf32>
      %50 = vector.shape_cast %49 : vector<16x128xf32> to vector<2x8x128xf32>
      %cst_27 = arith.constant dense<0.000000e+00> : vector<8x128xf32>
      %51 = vector.multi_reduction <add>, %50, %cst_27 [0] : vector<2x8x128xf32> to vector<8x128xf32>
      %52 = arith.addf %48, %51 : vector<8x128xf32>
      %c0_28 = arith.constant 0 : index
      %c0_29 = arith.constant 0 : index
      %53 = vector.load %arg7[%c0_28, %c0_29] : memref<8x128xf32, #tpu.memory_space<vmem>>, vector<8x128xf32>
      tpu.vector_store %arg7[%c0_28, %c0_29], %52 {strides = array<i32>} : memref<8x128xf32, #tpu.memory_space<vmem>>, vector<8x128xf32>,
    } else {
    }
    %c0_i32_5 = arith.constant 0 : i32
    %13 = arith.cmpi eq, %arg1, %c0_i32_5 : i32
    %14 = arith.extui %13 : i1 to i32
    %c0_i32_6 = arith.constant 0 : i32
    %15 = arith.cmpi ne, %14, %c0_i32_6 : i32
    scf.if %15 {
      %c0 = arith.constant 0 : index
      %c0_7 = arith.constant 0 : index
      %16 = vector.load %arg5[%c0, %c0_7] : memref<8x128xf32, #tpu.memory_space<vmem>>, vector<8x128xf32>
      %17 = vector.shape_cast %16 : vector<8x128xf32> to vector<1x8x128xf32>
      %cst = arith.constant dense<0.000000e+00> : vector<1xf32>
      %18 = vector.multi_reduction <add>, %17, %cst [1, 2] : vector<1x8x128xf32> to vector<1xf32>
      %19 = vector.shape_cast %18 : vector<1xf32> to vector<1x1x1xf32>
      %20 = vector.extract %19[0, 0, 0] : f32 from vector<1x1x1xf32>
      %c0_8 = arith.constant 0 : index
      %c0_9 = arith.constant 0 : index
      %21 = memref.load %arg4[%c0_8, %c0_9] : memref<1x3xf32, #tpu.memory_space<smem>>
      memref.store %20, %arg4[%c0_8, %c0_9] : memref<1x3xf32, #tpu.memory_space<smem>>
      %c0_10 = arith.constant 0 : index
      %c0_11 = arith.constant 0 : index
      %22 = vector.load %arg6[%c0_10, %c0_11] : memref<8x128xf32, #tpu.memory_space<vmem>>, vector<8x128xf32>
      %23 = vector.shape_cast %22 : vector<8x128xf32> to vector<1x8x128xf32>
      %cst_12 = arith.constant dense<0.000000e+00> : vector<1xf32>
      %24 = vector.multi_reduction <add>, %23, %cst_12 [1, 2] : vector<1x8x128xf32> to vector<1xf32>
      %25 = vector.shape_cast %24 : vector<1xf32> to vector<1x1x1xf32>
      %26 = vector.extract %25[0, 0, 0] : f32 from vector<1x1x1xf32>
      %c0_13 = arith.constant 0 : index
      %c1 = arith.constant 1 : index
      %27 = memref.load %arg4[%c0_13, %c1] : memref<1x3xf32, #tpu.memory_space<smem>>
      memref.store %26, %arg4[%c0_13, %c1] : memref<1x3xf32, #tpu.memory_space<smem>>
      %c0_14 = arith.constant 0 : index
      %c0_15 = arith.constant 0 : index
      %28 = vector.load %arg7[%c0_14, %c0_15] : memref<8x128xf32, #tpu.memory_space<vmem>>, vector<8x128xf32>
      %29 = vector.shape_cast %28 : vector<8x128xf32> to vector<1x8x128xf32>
      %cst_16 = arith.constant dense<0.000000e+00> : vector<1xf32>
      %30 = vector.multi_reduction <add>, %29, %cst_16 [1, 2] : vector<1x8x128xf32> to vector<1xf32>
      %31 = vector.shape_cast %30 : vector<1xf32> to vector<1x1x1xf32>
      %32 = vector.extract %31[0, 0, 0] : f32 from vector<1x1x1xf32>
      %c0_17 = arith.constant 0 : index
      %c2 = arith.constant 2 : index
      %33 = memref.load %arg4[%c0_17, %c2] : memref<1x3xf32, #tpu.memory_space<smem>>
      memref.store %32, %arg4[%c0_17, %c2] : memref<1x3xf32, #tpu.memory_space<smem>>
    } else {
    }
    return
  }
  func.func @transform_0(%arg0: i32, %arg1: i32) -> (i32, i32) {
    %c1_i32 = arith.constant 1 : i32
    %0 = arith.muli %arg0, %c1_i32 : i32
    %1 = arith.addi %0, %arg1 : i32
    %c0_i32 = arith.constant 0 : i32
    %2 = arith.minsi %1, %c0_i32 : i32
    %c0_i32_0 = arith.constant 0 : i32
    %c0_i32_1 = arith.constant 0 : i32
    return %2, %c0_i32_0 : i32, i32
  }
  func.func @transform_1(%arg0: i32, %arg1: i32) -> (i32, i32) {
    %c1_i32 = arith.constant 1 : i32
    %0 = arith.muli %arg0, %c1_i32 : i32
    %1 = arith.addi %0, %arg1 : i32
    %c0_i32 = arith.constant 0 : i32
    %2 = arith.minsi %1, %c0_i32 : i32
    %c0_i32_0 = arith.constant 0 : i32
    %c0_i32_1 = arith.constant 0 : i32
    return %2, %c0_i32_0 : i32, i32
  }
  func.func @transform_2(%arg0: i32, %arg1: i32) -> (i32, i32) {
    %c0_i32 = arith.constant 0 : i32
    %c0_i32_0 = arith.constant 0 : i32
    return %arg0, %c0_i32 : i32, i32
  }
}

</mosaic_0001>

<llo_original>
// kernel: dice_bce_loss.1
$region0: #{dice_bce_loss.1}
  #allocation0 [shape = 'u32[]', space=smem, size = 0x4, offset = 0x4, fixed_abs, tag = 'smem constant byte address 0x4 - core index']
  #allocation1 [shape = 'u32[72,128]{1,0:T(1,128)}', space=vmem, size = 0x9000, scoped, tag = 'internal scratch']
  #allocation2 [shape = 'f32[8,128]{1,0:T(8,128)}', space=vmem, size = 0x1000, scoped, tag = 'scratch operand']
  #allocation3 [shape = 'f32[8,128]{1,0:T(8,128)}', space=vmem, size = 0x1000, scoped, tag = 'scratch operand']
  #allocation4 [shape = 'f32[8,128]{1,0:T(8,128)}', space=vmem, size = 0x1000, scoped, tag = 'scratch operand']
  %s0 = inlined_call_operand.vmem [shape: f32[16,128], index: 0, kind: input, shape index: {}]
  %s1 = inlined_call_operand.vmem [shape: f32[16,128], index: 1, kind: input, shape index: {}]
  %s2 = inlined_call_operand.vmem [shape: f32[1,3], index: 2, kind: output, shape index: {}]
  %s3 = sld [smem:[#allocation0]]
  $region34: #{dice_bce_loss.1} parent=0
    _
  %s5 = ssub.s32 1, %s3
  %s6 = scalar_select 0, %s5, %s3
  $region1: #{dice_bce_loss.1} parent=0
    #allocation5 [shape = 'u8[512]{0}', space=smem, size = 0x200, scoped, tag = 'output window, operand 0, single buffered']
    #allocation6 [shape = 's32[1]{0}', space=sflag, size = 0x4, scoped, tag = 'scoped memory for dice_bce_loss.1']
    %7 = vsyncpa [#allocation6], 0
    // Predicated region
    $region2: #{dice_bce_loss.1} parent=1 // pred_check
      _
    $region3: #{dice_bce_loss.1} parent=1 // pred_check_branch
      %9 = sbr.rel (0) target = $region5
    $region4: #{dice_bce_loss.1} parent=1 // pred_region
      %s10 = sadd.s32 0, 0
      %p11 = scmp.lt.s32.totalorder %s10, 0
      %s12 = scalar_select %p11, %s10, 0
      %s13 = smul.u32 2, %s12
      %p14 = scmp.lt.s32.totalorder %s13, 1
      %s15 = scalar_select %p14, %s13, 1
      %s16 = smul.addr %s15, 8
      %s17 = scalar_lea.vmem %s0, %s16
      %s18 = sadd.s32 0, 0
      %p19 = scmp.lt.s32.totalorder %s18, 0
      %s20 = scalar_select %p19, %s18, 0
      %s21 = smul.u32 2, %s20
    $region5: #{dice_bce_loss.1} parent=1 // pred_fallthru
      _
    // Predicated region
    $region6: #{dice_bce_loss.1} parent=1 // pred_check
      _
    $region7: #{dice_bce_loss.1} parent=1 // pred_check_branch
      %23 = sbr.rel (0) target = $region9
    $region8: #{dice_bce_loss.1} parent=1 // pred_region
      %s24 = sadd.s32 0, 0
      %p25 = scmp.lt.s32.totalorder %s24, 0
      %s26 = scalar_select %p25, %s24, 0
      %s27 = smul.u32 2, %s26
      %p28 = scmp.lt.s32.totalorder %s27, 1
      %s29 = scalar_select %p28, %s27, 1
      %s30 = smul.addr %s29, 8
      %s31 = scalar_lea.vmem %s1, %s30
      %s32 = sadd.s32 0, 0
      %p33 = scmp.lt.s32.totalorder %s32, 0
      %s34 = scalar_select %p33, %s32, 0
      %s35 = smul.u32 2, %s34
    $region9: #{dice_bce_loss.1} parent=1 // pred_fallthru
      _
    %s36 = sadd.s32 0, 0
    %p37 = scmp.lt.s32.totalorder %s36, 0
    %s38 = scalar_select %p37, %s36, 0
    %s39 = smul.u32 2, %s38
    %p40 = scmp.lt.s32.totalorder %s39, 1
    %s41 = scalar_select %p40, %s39, 1
    %s42 = smul.addr %s41, 8
    %s43 = scalar_lea.vmem %s0, %s42
    %s44 = sadd.s32 0, 0
    %p45 = scmp.lt.s32.totalorder %s44, 0
    %s46 = scalar_select %p45, %s44, 0
    %s47 = smul.u32 2, %s46
    %p48 = scmp.lt.s32.totalorder %s47, 1
    %s49 = scalar_select %p48, %s47, 1
    %s50 = smul.addr %s49, 8
    %s51 = scalar_lea.vmem %s1, %s50
    %s52 = sadd.s32 0, 0
    %p53 = scmp.lt.s32.totalorder %s52, 0
    %s54 = scalar_select %p53, %s52, 0
    %s55 = smul.u32 2, %s54
    %p56 = scmp.lt.s32.totalorder %s55, 1
    %s57 = scalar_select %p56, %s55, 1
    %s58 = smul.addr %s57, 8
    %s59 = scalar_lea.vmem %s0, %s58
    %s60 = sadd.s32 0, 0
    %p61 = scmp.lt.s32.totalorder %s60, 0
    %s62 = scalar_select %p61, %s60, 0
    %s63 = smul.u32 2, %s62
    %s64 = sadd.s32 0, 0
    %p65 = scmp.lt.s32.totalorder %s64, 0
    %s66 = scalar_select %p65, %s64, 0
    %s67 = smul.u32 2, %s66
    %p68 = scmp.lt.s32.totalorder %s67, 1
    %s69 = scalar_select %p68, %s67, 1
    %s70 = smul.addr %s69, 8
    %s71 = scalar_lea.vmem %s1, %s70
    %s72 = sadd.s32 0, 0
    %p73 = scmp.lt.s32.totalorder %s72, 0
    %s74 = scalar_select %p73, %s72, 0
    %s75 = smul.u32 2, %s74
    %p76 = scmp.eq.s32.totalorder 0, 0
    // Predicated region
    $region10: #{dice_bce_loss.1} parent=1 // pred_check
      %p77 = pneg %p76
    $region11: #{dice_bce_loss.1} parent=1 // pred_check_branch
      %79 = sbr.rel (%p77) target = $region13
    $region12: #{dice_bce_loss.1} parent=1 // pred_region
      %80 = vst [vmem:[#allocation2] sm:$0xff] 0.0
      %81 = vst [vmem:[#allocation3] sm:$0xff] 0.0
      %82 = vst [vmem:[#allocation4] sm:$0xff] 0.0
    $region13: #{dice_bce_loss.1} parent=1 // pred_fallthru
      _
    %s83 = sadd.s32 0, 0
    %s84 = smul.u32 %s83, 16
    %s85 = sadd.s32 %s84, 16
    %p86 = scmp.le.s32.totalorder %s85, 16
    // Predicated region
    $region14: #{dice_bce_loss.1} parent=1 // pred_check
      %p87 = pneg %p86
    $region15: #{dice_bce_loss.1} parent=1 // pred_check_branch
      %89 = sbr.rel (%p87) target = $region17
    $region16: #{dice_bce_loss.1} parent=1 // pred_region
      %v90 = vld [vmem:[%s59] sm:$0xff]
      %v91 = vld [vmem:[%s59 + $0x8] sm:$0xff]
      %v92 = vld [vmem:[%s71] sm:$0xff]
      %v93 = vld [vmem:[%s71 + $0x8] sm:$0xff]
      %v94 = vmax.f32 %v90, 0.0
      %v95 = vmax.f32 %v91, 0.0
      %v96 = vand.u32 2147483647, %v90
      %v97 = vand.u32 2147483647, %v91
      %v98 = vsub.f32 0.0, %v96
      %v99 = vsub.f32 0.0, %v97
      %v100 = vmul.f32 %v98, 1.442695
      %v101 = vpow.pop %v100
      %v102 = vmul.f32 %v99, 1.442695
      %v103 = vpow.pop %v102
      %v104 = vadd.f32 %v101, 1.0
      %v105 = vlog2.pop %v104
      %v106 = vmul.f32 %v105, 0.6931472
      %v107 = vmul.f32 -0.5, %v101
      %v108 = vadd.f32 %v107, 1.0
      %v109 = vmul.f32 %v108, %v101
      %v110 = vand.u32 2147483647, %v101
      %vm111 = vcmp.lt.f32.partialorder %v110, 0.0004427343
      %v112 = vsel %vm111, %v109, %v106
      %v113 = vadd.f32 %v103, 1.0
      %v114 = vlog2.pop %v113
      %v115 = vmul.f32 %v114, 0.6931472
      %v116 = vmul.f32 -0.5, %v103
      %v117 = vadd.f32 %v116, 1.0
      %v118 = vmul.f32 %v117, %v103
      %v119 = vand.u32 2147483647, %v103
      %vm120 = vcmp.lt.f32.partialorder %v119, 0.0004427343
      %v121 = vsel %vm120, %v118, %v115
      %v122 = vadd.f32 %v94, %v112
      %v123 = vadd.f32 %v95, %v121
      %v124 = vld [vmem:[#allocation2] sm:$0xff]
      %v125 = vadd.f32 %v122, %v123
      %v126 = vadd.f32 %v124, %v125
      %127 = vst [vmem:[#allocation2] sm:$0xff] %v126
      %v128 = vld [vmem:[#allocation3] sm:$0xff]
      %v129 = vmul.f32 %v90, %v92
      %v130 = vmul.f32 %v91, %v93
      %v131 = vadd.f32 %v129, %v130
      %v132 = vadd.f32 %v128, %v131
      %133 = vst [vmem:[#allocation3] sm:$0xff] %v132
      %v134 = vld [vmem:[#allocation4] sm:$0xff]
      %v135 = vadd.f32 %v90, %v92
      %v136 = vadd.f32 %v91, %v93
      %v137 = vadd.f32 %v135, %v136
      %v138 = vadd.f32 %v134, %v137
      %139 = vst [vmem:[#allocation4] sm:$0xff] %v138
    $region17: #{dice_bce_loss.1} parent=1 // pred_fallthru
      _
    %p140 = scmp.gt.s32.totalorder %s85, 16
    // Predicated region
    $region18: #{dice_bce_loss.1} parent=1 // pred_check
      %p141 = pneg %p140
    $region19: #{dice_bce_loss.1} parent=1 // pred_check_branch
      %143 = sbr.rel (%p141) target = $region21
    $region20: #{dice_bce_loss.1} parent=1 // pred_region
      %v144 = vld [vmem:[%s59] sm:$0xff]
      %v145 = vld [vmem:[%s59 + $0x8] sm:$0xff]
      %v146 = vld [vmem:[%s71] sm:$0xff]
      %v147 = vld [vmem:[%s71 + $0x8] sm:$0xff]
      %v148 = vlaneseq
      %v149 = vshrl.u32 %v148, 7
      %v150 = vadd.s32 %v149, 8
      %v151 = vstv %s84
      %v152 = vadd.s32 %v149, %v151
      %v153 = vadd.s32 %v150, %v151
      %vm154 = vcmp.lt.s32.totalorder %v152, 16
      %vm155 = vcmp.lt.s32.totalorder %v153, 16
      %v156 = vsel %vm154, %v144, 0.0
      %v157 = vsel %vm155, %v145, 0.0
      %v158 = vsel %vm154, %v146, 0.0
      %v159 = vsel %vm155, %v147, 0.0
      %v160 = vmax.f32 %v156, 0.0
      %v161 = vmax.f32 %v157, 0.0
      %v162 = vand.u32 2147483647, %v156
      %v163 = vand.u32 2147483647, %v157
      %v164 = vsub.f32 0.0, %v162
      %v165 = vsub.f32 0.0, %v163
      %v166 = vmul.f32 %v164, 1.442695
      %v167 = vpow.pop %v166
      %v168 = vmul.f32 %v165, 1.442695
      %v169 = vpow.pop %v168
      %v170 = vadd.f32 %v167, 1.0
      %v171 = vlog2.pop %v170
      %v172 = vmul.f32 %v171, 0.6931472
      %v173 = vmul.f32 -0.5, %v167
      %v174 = vadd.f32 %v173, 1.0
      %v175 = vmul.f32 %v174, %v167
      %v176 = vand.u32 2147483647, %v167
      %vm177 = vcmp.lt.f32.partialorder %v176, 0.0004427343
      %v178 = vsel %vm177, %v175, %v172
      %v179 = vadd.f32 %v169, 1.0
      %v180 = vlog2.pop %v179
      %v181 = vmul.f32 %v180, 0.6931472
      %v182 = vmul.f32 -0.5, %v169
      %v183 = vadd.f32 %v182, 1.0
      %v184 = vmul.f32 %v183, %v169
      %v185 = vand.u32 2147483647, %v169
      %vm186 = vcmp.lt.f32.partialorder %v185, 0.0004427343
      %v187 = vsel %vm186, %v184, %v181
      %v188 = vadd.f32 %v160, %v178
      %v189 = vadd.f32 %v161, %v187
      %v190 = vsel %vm154, %v188, 0.0
      %v191 = vsel %vm155, %v189, 0.0
      %v192 = vld [vmem:[#allocation2] sm:$0xff]
      %v193 = vadd.f32 %v190, %v191
      %v194 = vadd.f32 %v192, %v193
      %195 = vst [vmem:[#allocation2] sm:$0xff] %v194
      %v196 = vld [vmem:[#allocation3] sm:$0xff]
      %v197 = vmul.f32 %v156, %v158
      %v198 = vmul.f32 %v157, %v159
      %v199 = vadd.f32 %v197, %v198
      %v200 = vadd.f32 %v196, %v199
      %201 = vst [vmem:[#allocation3] sm:$0xff] %v200
      %v202 = vld [vmem:[#allocation4] sm:$0xff]
      %v203 = vadd.f32 %v156, %v158
      %v204 = vadd.f32 %v157, %v159
      %v205 = vadd.f32 %v203, %v204
      %v206 = vadd.f32 %v202, %v205
      %207 = vst [vmem:[#allocation4] sm:$0xff] %v206
    $region21: #{dice_bce_loss.1} parent=1 // pred_fallthru
      _
    // Predicated region
    $region22: #{dice_bce_loss.1} parent=1 // pred_check
      %p208 = pneg %p76
    $region23: #{dice_bce_loss.1} parent=1 // pred_check_branch
      %210 = sbr.rel (%p208) target = $region25
    $region24: #{dice_bce_loss.1} parent=1 // pred_region
      %v211 = vld [vmem:[#allocation2] sm:$0xff]
      %212 = vadd.xlane.f32.xlu0 %v211
      %v213 = vpop.xlane.xlu0 %212
      %v214 = vrot.slane %v213, 4
      %v215 = vadd.f32 %v213, %v214
      %v216 = vrot.slane %v215, 2
      %v217 = vadd.f32 %v215, %v216
      %v218 = vrot.slane %v217, 1
      %v219 = vadd.f32 %v217, %v218
      %s220 = vtos %v219
      %s221 = scalar_lea.smem [#allocation5], 0
      %222 = sst [smem:[%s221]] %s220
      %v223 = vld [vmem:[#allocation3] sm:$0xff]
      %224 = vadd.xlane.f32.xlu0 %v223
      %v225 = vpop.xlane.xlu0 %224
      %v226 = vrot.slane %v225, 4
      %v227 = vadd.f32 %v225, %v226
      %v228 = vrot.slane %v227, 2
      %v229 = vadd.f32 %v227, %v228
      %v230 = vrot.slane %v229, 1
      %v231 = vadd.f32 %v229, %v230
      %s232 = vtos %v231
      %s233 = scalar_lea.smem [#allocation5], 1
      %234 = sst [smem:[%s233]] %s232
      %v235 = vld [vmem:[#allocation4] sm:$0xff]
      %236 = vadd.xlane.f32.xlu0 %v235
      %v237 = vpop.xlane.xlu0 %236
      %v238 = vrot.slane %v237, 4
      %v239 = vadd.f32 %v237, %v238
      %v240 = vrot.slane %v239, 2
      %v241 = vadd.f32 %v239, %v240
      %v242 = vrot.slane %v241, 1
      %v243 = vadd.f32 %v241, %v242
      %s244 = vtos %v243
      %s245 = scalar_lea.smem [#allocation5], 2
      %246 = sst [smem:[%s245]] %s244
    $region25: #{dice_bce_loss.1} parent=1 // pred_fallthru
      _
    // Predicated region
    $region26: #{dice_bce_loss.1} parent=1 // pred_check
      _
    $region27: #{dice_bce_loss.1} parent=1 // pred_check_branch
      %248 = sbr.rel (0) target = $region29
    $region28: #{dice_bce_loss.1} parent=1 // pred_region
      %250 = vsyncadd [#allocation6], 0
      %s252 = sshll.u32 %s2, 4
      %s253 = int_to_ptr.vmem [resolvable:$true] %s252
      %255 = dma.smem_to_vmem [#allocation5], 16, %s253, [#allocation6]
    $region29: #{dice_bce_loss.1} parent=1 // pred_fallthru
      _
    // Predicated region
    $region30: #{dice_bce_loss.1} parent=1 // pred_check
      _
    $region31: #{dice_bce_loss.1} parent=1 // pred_check_branch
      %257 = sbr.rel (0) target = $region33
    $region32: #{dice_bce_loss.1} parent=1 // pred_region
      %259 = dma.done [#allocation6], 16
    $region33: #{dice_bce_loss.1} parent=1 // pred_fallthru
      _
    %260 = sfence
    %261 = vsyncpa [#allocation6], 1

</llo_original>
